<compile_context>
chip_gen: v6e
topology: v6e:2x2x1
jax: 0.10.0
libtpu: 0.0.40
codegen_flags: <defaults>
</compile_context>

<pallas_src>
import math

import jax
import jax.numpy as jnp
from jax.experimental import pallas as pl
from jax.experimental.pallas import tpu as pltpu


def _round_up(x, m):
    return ((x + m - 1) // m) * m


def _cdiv(a, b):
    return (a + b - 1) // b


def _block_diag(w, p):
    """(k, n) -> (p*k, p*n) block-diagonal with p copies of w along the diagonal."""
    if p == 1:
        return w
    k, n = w.shape
    eye = jnp.eye(p, dtype=w.dtype)
    return (eye[:, None, :, None] * w[None, :, None, :]).reshape(p * k, p * n)


def _mxu_width():
    """256 for v6e/v7x-class chips, 128 for v5e.  Fallback 256 (still correct on v5e,
    just one extra MXU pass per push for the packed hidden layer)."""
    try:
        kind = jax.devices()[0].device_kind.lower()
    except Exception:
        kind = ""
    return 128 if "v5" in kind else 256


def rnd_mlp_kernel(x_ref, w1_ref, b1_ref, w2_ref, b2_ref, w3_ref, b3_ref, o_ref):
    """Fused 3-layer MLP on one (packed) batch tile: relu(relu(x@W1+b1)@W2+b2)@W3+b3.

    Matmuls run on the MXU in the compute dtype with f32 accumulation; bias add / ReLU
    stay in f32 on the VPU; the final cast targets the output tile dtype.  ReLU is
    elementwise, so it commutes with the block-diagonal row packing done in the wrapper.
    """
    x = x_ref[...]                                                     # (R, P*obs)
    h1 = jnp.dot(x, w1_ref[...], preferred_element_type=jnp.float32) + b1_ref[...]
    h1 = jnp.maximum(h1, 0.0).astype(w2_ref.dtype)
    h2 = jnp.dot(h1, w2_ref[...], preferred_element_type=jnp.float32) + b2_ref[...]
    h2 = jnp.maximum(h2, 0.0).astype(w3_ref.dtype)
    out = jnp.dot(h2, w3_ref[...], preferred_element_type=jnp.float32) + b3_ref[...]
    o_ref[...] = out.astype(o_ref.dtype)                               # (R, P*16)


def rnd_forward_reference(state, params):
    """Pure-JAX f32 reference; also the dispatch target for tiny batches."""
    w1, b1, w2, b2, w3, b3 = params
    h = jnp.maximum(state @ w1 + b1, 0.0)
    h = jnp.maximum(h @ w2 + b2, 0.0)
    return h @ w3 + b3


def rnd_forward(state, params, *, compute_dtype=jnp.bfloat16, out_dtype=jnp.float32,
                pack=None, max_tile_rows=2048, vmem_tile_budget=6 << 20,
                min_rows_for_pallas=1024):
    """RND state-representation forward on `state` (batch, obs_size) -> (batch, 16).

    `params` = (w1, b1, w2, b2, w3, b3) with weights shaped (in, out), biases (1, out).

    NOTE: compute_dtype=bfloat16 diverges from the f32 PyTorch reference at the ~1e-2
    level.  For RND specifically, predictor and target networks must use identical
    precision or the intrinsic reward picks up a systematic bias; pass
    compute_dtype=jnp.float32 for exact parity.
    """
    w1, b1, w2, b2, w3, b3 = params
    batch, obs = state.shape
    h1_dim, h2_dim, out_dim = w1.shape[1], w2.shape[1], w3.shape[1]

    # Tiny batches (incl. batch == 0): kernel launch + DMA setup dwarfs ~30 KFLOPs of
    # work -> plain XLA forward.
    if batch == 0 or batch < min_rows_for_pallas:
        return rnd_forward_reference(state, params).astype(out_dtype)

    in_bytes = jnp.dtype(compute_dtype).itemsize
    out_bytes = jnp.dtype(out_dtype).itemsize

    # Packing factor: P logical rows per packed row; hidden K/N become P*64 wide, so cap
    # at the MXU width (256 on v6e/v7x -> P=4, 128 on v5e -> P=2).
    if pack is None:
        mxu = _mxu_width()
        pack = max([p for p in (1, 2, 4) if p * max(h1_dim, h2_dim) <= mxu] or [1])
    pack = int(pack)

    packed_obs = pack * obs
    packed_out = pack * out_dim
    packed_needed = _cdiv(batch, pack)

    # Packed-row tile from an obs-aware VMEM budget: double-buffered in/out tiles plus
    # f32 + compute-dtype intermediates.  Keeps large obs inside v5e's 16 MiB scoped-VMEM
    # default (and v7x's smaller 64 MiB physical VMEM) while staying big enough to
    # amortize the ~0.35 us per-grid-step overhead.
    per_row = (2 * packed_obs * in_bytes                     # input tile, double-buffered
               + 2 * packed_out * out_bytes                  # output tile, double-buffered
               + 2 * pack * max(h1_dim, h2_dim) * (4 + in_bytes))   # h1/h2 intermediates
    tile_rows = int(max(16, min(max_tile_rows, vmem_tile_budget // per_row)))
    tile_rows = (tile_rows // 16) * 16                       # bf16 sublane packing
    if packed_needed <= tile_rows:
        if packed_needed >= 32:
            # Split into >=2 tiles so both TensorCores get work on v7x.
            tile_rows = _round_up(_cdiv(packed_needed, 2), 16)
        else:
            tile_rows = _round_up(packed_needed, 16)
    packed_padded = _round_up(packed_needed, tile_rows)
    grid = (packed_padded // tile_rows,)

    # Cast + zero-pad + row-pack the activations.  The reshape is free (same row-major
    # bytes); padded rows are zero so packed garbage stays finite and is sliced off.
    state_c = state.astype(compute_dtype)
    pad = packed_padded * pack - batch
    if pad:
        state_c = jnp.pad(state_c, ((0, pad), (0, 0)))
    x_packed = state_c.reshape(packed_padded, packed_obs)

    # Block-diagonal weights / lane-tiled biases (tiny; VMEM-resident for the whole grid).
    w1p = _block_diag(w1.astype(compute_dtype), pack)        # (P*obs, P*64)
    w2p = _block_diag(w2.astype(compute_dtype), pack)        # (P*64,  P*64)
    w3p = _block_diag(w3.astype(compute_dtype), pack)        # (P*64,  P*16)
    b1p = jnp.tile(b1.astype(jnp.float32).reshape(1, -1), (1, pack))
    b2p = jnp.tile(b2.astype(jnp.float32).reshape(1, -1), (1, pack))
    b3p = jnp.tile(b3.astype(jnp.float32).reshape(1, -1), (1, pack))

    cost = pl.CostEstimate(
        flops=2 * batch * (obs * h1_dim + h1_dim * h2_dim + h2_dim * out_dim),
        transcendentals=0,
        bytes_accessed=(batch * obs * in_bytes
                        + sum(int(a.size) * a.dtype.itemsize
                              for a in (w1p, w2p, w3p, b1p, b2p, b3p))
                        + batch * out_dim * out_bytes),
    )

    # NOTE: an 8-way pack of W3 alone could make the output fully 128-lane dense, but it
    # needs an in-kernel sublane relayout of h2; at P=4 the 64-wide slab is already the
    # sweet spot for push count, so we keep it.
    out_packed = pl.pallas_call(
        rnd_mlp_kernel,
        out_shape=jax.ShapeDtypeStruct((packed_padded, packed_out), out_dtype),
        grid=grid,
        in_specs=[
            # Streamed packed-batch tile (auto double-buffered HBM<->VMEM pipeline).
            pl.BlockSpec((tile_rows, packed_obs), lambda i: (i, 0)),
            # Weights/biases: full-shape blocks, constant index_map -> VMEM-resident.
            pl.BlockSpec(w1p.shape, lambda i: (0, 0)),
            pl.BlockSpec(b1p.shape, lambda i: (0, 0)),
            pl.BlockSpec(w2p.shape, lambda i: (0, 0)),
            pl.BlockSpec(b2p.shape, lambda i: (0, 0)),
            pl.BlockSpec(w3p.shape, lambda i: (0, 0)),
            pl.BlockSpec(b3p.shape, lambda i: (0, 0)),
        ],
        out_specs=pl.BlockSpec((tile_rows, packed_out), lambda i: (i, 0)),
        compiler_params=pltpu.CompilerParams(
            dimension_semantics=("parallel",),   # megacore / 2-TC sharding on v7x
        ),
        cost_estimate=cost,
    )(x_packed, w1p, b1p, w2p, b2p, w3p, b3p)

    # Unpack: (packed_padded, P*16) row-major == (packed_padded*P, 16); drop padding.
    out = out_packed.reshape(packed_padded * pack, out_dim)
    if pad:
        out = out[:batch]
    return out


def init_rnd_params(key, obs_size, hidden=(64, 64, 16)):
    """Deterministic init mimicking PyTorch nn.Linear default (Kaiming-uniform).

    Weights returned as (in_features, out_features); biases as (1, out_features)."""
    dims = (obs_size,) + tuple(hidden)
    params = []
    for i in range(len(hidden)):
        fan_in, fan_out = dims[i], dims[i + 1]
        key, kw, kb = jax.random.split(key, 3)
        bound = math.sqrt(1.0 / fan_in)
        w = jax.random.uniform(kw, (fan_in, fan_out), jnp.float32, -bound, bound)
        b = jax.random.uniform(kb, (1, fan_out), jnp.float32, -bound, bound)
        params.extend([w, b])
    return tuple(params)


if __name__ == "__main__":
    key = jax.random.PRNGKey(0)

    obs_size = 32          # obs_size passed to RNDNetwork.__init__
    state_rep_size = 16    # fixed by the module

    k_small, k_big, k_params = jax.random.split(key, 3)
    params = init_rnd_params(k_params, obs_size, hidden=(64, 64, 16))

    # --- Pallas path (forced) on a modest batch that exercises packing + padding. ---
    batch = 300            # deliberately not a multiple of pack * tile_rows
    state = jax.random.normal(k_big, (batch, obs_size), dtype=jnp.float32)
    out = jax.block_until_ready(rnd_forward(state, params, min_rows_for_pallas=0))
    assert out.shape == (batch, state_rep_size), out.shape

    # Tight check: same bf16-compute / f32-accumulate math in pure JAX.
    w1, b1, w2, b2, w3, b3 = params
    xb = state.astype(jnp.bfloat16)
    w1b, w2b, w3b = (w.astype(jnp.bfloat16) for w in (w1, w2, w3))
    ref = jnp.maximum(jnp.dot(xb, w1b, preferred_element_type=jnp.float32) + b1, 0.0
                      ).astype(jnp.bfloat16)
    ref = jnp.maximum(jnp.dot(ref, w2b, preferred_element_type=jnp.float32) + b2, 0.0
                      ).astype(jnp.bfloat16)
    ref = jnp.dot(ref, w3b, preferred_element_type=jnp.float32) + b3
    assert jnp.allclose(out, ref, atol=2e-2, rtol=2e-2), float(jnp.max(jnp.abs(out - ref)))

    # Looser semantics check against the full-f32 PyTorch-equivalent forward.
    ref_f32 = rnd_forward_reference(state, params)
    assert jnp.allclose(out, ref_f32, atol=1e-1, rtol=1e-1), (
        float(jnp.max(jnp.abs(out - ref_f32))))

    # f32-compute switch (exact-parity mode) also runs through the Pallas path.
    out_f32 = jax.block_until_ready(
        rnd_forward(state, params, compute_dtype=jnp.float32, min_rows_for_pallas=0))
    assert jnp.allclose(out_f32, ref_f32, atol=2e-2, rtol=2e-2), (
        float(jnp.max(jnp.abs(out_f32 - ref_f32))))

    # --- Small-batch dispatch: wrapper falls back to plain XLA (launch cost >> work). ---
    state_small = jax.random.normal(k_small, (2, obs_size), dtype=jnp.float32)
    out_small = jax.block_until_ready(rnd_forward(state_small, params))
    assert out_small.shape == (2, state_rep_size)
    assert jnp.allclose(out_small, rnd_forward_reference(state_small, params),
                        atol=1e-5, rtol=1e-5)

    print("KERNEL_OK")
</pallas_src>

<mosaic_0001>
module attributes {stable_mosaic.version = 11 : i64} {
  func.func @rnd_mlp_kernel(%arg0: i32, %arg1: memref<48x128xbf16, #tpu.memory_space<vmem>>, %arg2: memref<128x256xbf16, #tpu.memory_space<vmem>>, %arg3: memref<1x256xf32, #tpu.memory_space<vmem>>, %arg4: memref<256x256xbf16, #tpu.memory_space<vmem>>, %arg5: memref<1x256xf32, #tpu.memory_space<vmem>>, %arg6: memref<256x64xbf16, #tpu.memory_space<vmem>>, %arg7: memref<1x64xf32, #tpu.memory_space<vmem>>, %arg8: memref<48x64xf32, #tpu.memory_space<vmem>>) attributes {dimension_semantics = [#tpu.dimension_semantics<parallel>], iteration_bounds = array<i64: 2>, scalar_prefetch = 0 : i64, scratch_operands = 0 : i64, tpu.core_type = #tpu.core_type<tc>, window_params = [{transform_indices = @transform_0, window_bounds = array<i64: 48, 128>}, {pipeline_mode = #tpu.pipeline_mode<synchronous>, transform_indices = @transform_1, window_bounds = array<i64: 128, 256>}, {pipeline_mode = #tpu.pipeline_mode<synchronous>, transform_indices = @transform_2, window_bounds = array<i64: 1, 256>}, {pipeline_mode = #tpu.pipeline_mode<synchronous>, transform_indices = @transform_3, window_bounds = array<i64: 256, 256>}, {pipeline_mode = #tpu.pipeline_mode<synchronous>, transform_indices = @transform_4, window_bounds = array<i64: 1, 256>}, {pipeline_mode = #tpu.pipeline_mode<synchronous>, transform_indices = @transform_5, window_bounds = array<i64: 256, 64>}, {pipeline_mode = #tpu.pipeline_mode<synchronous>, transform_indices = @transform_6, window_bounds = array<i64: 1, 64>}, {transform_indices = @transform_7, window_bounds = array<i64: 48, 64>}]} {
    %c0 = arith.constant 0 : index
    %c0_0 = arith.constant 0 : index
    %0 = vector.load %arg1[%c0, %c0_0] : memref<48x128xbf16, #tpu.memory_space<vmem>>, vector<48x128xbf16>
    %c0_1 = arith.constant 0 : index
    %c0_2 = arith.constant 0 : index
    %1 = vector.load %arg2[%c0_1, %c0_2] : memref<128x256xbf16, #tpu.memory_space<vmem>>, vector<128x256xbf16>
    %cst = arith.constant dense<0.000000e+00> : vector<48x256xf32>
    %2 = tpu.matmul %0, %1, %cst {dimension_numbers = #tpu.dot_dimension_numbers<[1], [0], [0], [1], [0, 0, 1, 1], [], []>} : vector<48x128xbf16>, vector<128x256xbf16>, vector<48x256xf32> -> vector<48x256xf32>
    %c0_3 = arith.constant 0 : index
    %c0_4 = arith.constant 0 : index
    %3 = vector.load %arg3[%c0_3, %c0_4] : memref<1x256xf32, #tpu.memory_space<vmem>>, vector<1x256xf32>
    %4 = vector.broadcast %3 : vector<1x256xf32> to vector<48x256xf32>
    %5 = arith.addf %2, %4 : vector<48x256xf32>
    %cst_5 = arith.constant 0.000000e+00 : f32
    %6 = vector.broadcast %cst_5 : f32 to vector<48x256xf32>
    %7 = arith.maximumf %5, %6 : vector<48x256xf32>
    %8 = arith.truncf %7 : vector<48x256xf32> to vector<48x256xbf16>
    %c0_6 = arith.constant 0 : index
    %c0_7 = arith.constant 0 : index
    %9 = vector.load %arg4[%c0_6, %c0_7] : memref<256x256xbf16, #tpu.memory_space<vmem>>, vector<256x256xbf16>
    %cst_8 = arith.constant dense<0.000000e+00> : vector<48x256xf32>
    %10 = tpu.matmul %8, %9, %cst_8 {dimension_numbers = #tpu.dot_dimension_numbers<[1], [0], [0], [1], [0, 0, 1, 1], [], []>} : vector<48x256xbf16>, vector<256x256xbf16>, vector<48x256xf32> -> vector<48x256xf32>
    %c0_9 = arith.constant 0 : index
    %c0_10 = arith.constant 0 : index
    %11 = vector.load %arg5[%c0_9, %c0_10] : memref<1x256xf32, #tpu.memory_space<vmem>>, vector<1x256xf32>
    %12 = vector.broadcast %11 : vector<1x256xf32> to vector<48x256xf32>
    %13 = arith.addf %10, %12 : vector<48x256xf32>
    %cst_11 = arith.constant 0.000000e+00 : f32
    %14 = vector.broadcast %cst_11 : f32 to vector<48x256xf32>
    %15 = arith.maximumf %13, %14 : vector<48x256xf32>
    %16 = arith.truncf %15 : vector<48x256xf32> to vector<48x256xbf16>
    %c0_12 = arith.constant 0 : index
    %c0_13 = arith.constant 0 : index
    %17 = vector.load %arg6[%c0_12, %c0_13] : memref<256x64xbf16, #tpu.memory_space<vmem>>, vector<256x64xbf16>
    %cst_14 = arith.constant dense<0.000000e+00> : vector<48x64xf32>
    %18 = tpu.matmul %16, %17, %cst_14 {dimension_numbers = #tpu.dot_dimension_numbers<[1], [0], [0], [1], [0, 0, 1, 1], [], []>} : vector<48x256xbf16>, vector<256x64xbf16>, vector<48x64xf32> -> vector<48x64xf32>
    %c0_15 = arith.constant 0 : index
    %c0_16 = arith.constant 0 : index
    %19 = vector.load %arg7[%c0_15, %c0_16] : memref<1x64xf32, #tpu.memory_space<vmem>>, vector<1x64xf32>
    %20 = vector.broadcast %19 : vector<1x64xf32> to vector<48x64xf32>
    %21 = arith.addf %18, %20 : vector<48x64xf32>
    %c0_17 = arith.constant 0 : index
    %c0_18 = arith.constant 0 : index
    %22 = vector.load %arg8[%c0_17, %c0_18] : memref<48x64xf32, #tpu.memory_space<vmem>>, vector<48x64xf32>
    tpu.vector_store %arg8[%c0_17, %c0_18], %21 {strides = array<i32>} : memref<48x64xf32, #tpu.memory_space<vmem>>, vector<48x64xf32>,
    return
  }
  func.func @transform_0(%arg0: i32) -> (i32, i32) {
    %c0_i32 = arith.constant 0 : i32
    %c0_i32_0 = arith.constant 0 : i32
    return %arg0, %c0_i32 : i32, i32
  }
  func.func @transform_1(%arg0: i32) -> (i32, i32) {
    %c0_i32 = arith.constant 0 : i32
    %c0_i32_0 = arith.constant 0 : i32
    %c0_i32_1 = arith.constant 0 : i32
    return %c0_i32, %c0_i32_0 : i32, i32
  }
  func.func @transform_2(%arg0: i32) -> (i32, i32) {
    %c0_i32 = arith.constant 0 : i32
    %c0_i32_0 = arith.constant 0 : i32
    %c0_i32_1 = arith.constant 0 : i32
    return %c0_i32, %c0_i32_0 : i32, i32
  }
  func.func @transform_3(%arg0: i32) -> (i32, i32) {
    %c0_i32 = arith.constant 0 : i32
    %c0_i32_0 = arith.constant 0 : i32
    %c0_i32_1 = arith.constant 0 : i32
    return %c0_i32, %c0_i32_0 : i32, i32
  }
  func.func @transform_4(%arg0: i32) -> (i32, i32) {
    %c0_i32 = arith.constant 0 : i32
    %c0_i32_0 = arith.constant 0 : i32
    %c0_i32_1 = arith.constant 0 : i32
    return %c0_i32, %c0_i32_0 : i32, i32
  }
  func.func @transform_5(%arg0: i32) -> (i32, i32) {
    %c0_i32 = arith.constant 0 : i32
    %c0_i32_0 = arith.constant 0 : i32
    %c0_i32_1 = arith.constant 0 : i32
    return %c0_i32, %c0_i32_0 : i32, i32
  }
  func.func @transform_6(%arg0: i32) -> (i32, i32) {
    %c0_i32 = arith.constant 0 : i32
    %c0_i32_0 = arith.constant 0 : i32
    %c0_i32_1 = arith.constant 0 : i32
    return %c0_i32, %c0_i32_0 : i32, i32
  }
  func.func @transform_7(%arg0: i32) -> (i32, i32) {
    %c0_i32 = arith.constant 0 : i32
    %c0_i32_0 = arith.constant 0 : i32
    return %arg0, %c0_i32 : i32, i32
  }
}

</mosaic_0001>

<llo_original>
// kernel: tpu_custom_call.1
$region0: #{tpu_custom_call.1}
  #allocation0 [shape = 'u32[]', space=smem, size = 0x4, offset = 0x4, fixed_abs, tag = 'smem constant byte address 0x4 - core index']
  #allocation1 [shape = 'u32[144,128]{1,0:T(1,128)}', space=vmem, size = 0x12000, scoped, tag = 'internal scratch']
  %s0 = inlined_call_operand.vmem [shape: bf16[96,128], index: 0, kind: input, shape index: {}]
  %s1 = inlined_call_operand.vmem [shape: bf16[128,256], index: 1, kind: input, shape index: {}]
  %s2 = inlined_call_operand.vmem [shape: f32[1,256], index: 2, kind: input, shape index: {}]
  %s3 = inlined_call_operand.hbm [shape: bf16[256,256], index: 3, kind: input, shape index: {}]
  %s4 = inlined_call_operand.vmem [shape: f32[1,256], index: 4, kind: input, shape index: {}]
  %s5 = inlined_call_operand.vmem [shape: bf16[256,64], index: 5, kind: input, shape index: {}]
  %s6 = inlined_call_operand.vmem [shape: f32[1,64], index: 6, kind: input, shape index: {}]
  %s7 = inlined_call_operand.vmem [shape: f32[96,64], index: 7, kind: output, shape index: {}]
  %s8 = sld [smem:[#allocation0]]
  $region65: #{tpu_custom_call.1} parent=0
    _
  %s10 = ssub.s32 1, %s8
  %s11 = scalar_select 0, %s10, %s8
  $region1: #{tpu_custom_call.1} parent=0
    #allocation2 [shape = 'u8[131072]{0}', space=vmem, size = 0x20000, scoped, tag = 'input window, operand 3, single buffered']
    #allocation3 [shape = 's32[2]{0}', space=sflag, size = 0x8, scoped, tag = 'scoped memory for tpu_custom_call.1']
    %12 = vsyncpa [#allocation3], 0
    loop: start=0, step=1, limit=4
    $region2: #{tpu_custom_call.1} parent=1 // loop_pre_header
      _
    $region3: #{tpu_custom_call.1} parent=1 // loop_header
      %s14 = sphi 0, %s18
      %p15 = scmp.ge.s32.totalorder %s14, 4
      %s24 = sphi 0, %s26
      %s27 = sphi 0, %s24
      %s28 = sphi 0, %s27
      %s44 = sphi 0, %s28
      %s48 = sphi 0, %s48
      %s50 = sphi 0, %s48
      %s51 = sphi 0, %s50
      %s65 = sphi 0, %s51
      %s69 = sphi 0, %s69
      %s71 = sphi 0, %s69
      %s72 = sphi 0, %s71
      %s86 = sphi 0, %s72
      %s90 = sphi 0, %s90
      %s92 = sphi 0, %s90
      %s93 = sphi 0, %s92
      %s107 = sphi 0, %s93
      %s111 = sphi 0, %s111
      %s113 = sphi 0, %s111
      %s114 = sphi 0, %s113
      %s128 = sphi 0, %s114
      %s132 = sphi 0, %s132
      %s134 = sphi 0, %s132
      %s135 = sphi 0, %s134
      %s149 = sphi 0, %s135
      %s153 = sphi 0, %s153
      %s155 = sphi 0, %s153
      %s156 = sphi 0, %s155
      %s170 = sphi 0, %s156
      %s176 = sphi 0, %s178
      %s179 = sphi 0, %s176
      %s180 = sphi 0, %s179
      %s196 = sphi 0, %s180
    $region4: #{tpu_custom_call.1} parent=1 // loop_header_branch
      %17 = sbr.rel (%p15) target = $region8
    $region5: #{tpu_custom_call.1} parent=1 // loop_body
      %s19 = ssub.s32 %s14, 1
      %s20 = ssub.s32 %s14, 2
      %s21 = sadd.s32 %s14, 1
      %s22 = ssub.s32 %s14, %s21
      %p23 = scmp.eq.s32.totalorder %s22, 0
      %s25 = sadd.s32 %s24, 1
      %s26 = scalar_select %p23, %s24, %s25
      %p29 = pneg %p23
      %p30 = scmp.eq.s32.totalorder %s14, 1
      %p31 = por %p29, %p30
      %p32 = scmp.ne.s32.totalorder %s24, %s27
      %p33 = scmp.eq.s32.totalorder %s14, 0
      %p34 = por %p32, %p33
      %p35 = scmp.ne.s32.totalorder %s24, %s27
      %p36 = scmp.eq.s32.totalorder %s19, 1
      %p37 = por %p35, %p36
      %p38 = scmp.ne.s32.totalorder %s27, %s28
      %p39 = scmp.eq.s32.totalorder %s19, 0
      %p40 = por %p38, %p39
      %p41 = scmp.ne.s32.totalorder %s27, %s28
      %p42 = scmp.eq.s32.totalorder %s20, 1
      %p43 = por %p41, %p42
      %p45 = scmp.ne.s32.totalorder %s28, %s44
      %p46 = scmp.eq.s32.totalorder %s20, 0
      %p47 = por %p45, %p46
      %s49 = sadd.s32 %s48, 1
      %p52 = scmp.eq.s32.totalorder %s14, 1
      %p53 = scmp.ne.s32.totalorder %s48, %s50
      %p54 = scmp.eq.s32.totalorder %s14, 0
      %p55 = por %p53, %p54
      %p56 = scmp.ne.s32.totalorder %s48, %s50
      %p57 = scmp.eq.s32.totalorder %s19, 1
      %p58 = por %p56, %p57
      %p59 = scmp.ne.s32.totalorder %s50, %s51
      %p60 = scmp.eq.s32.totalorder %s19, 0
      %p61 = por %p59, %p60
      %p62 = scmp.ne.s32.totalorder %s50, %s51
      %p63 = scmp.eq.s32.totalorder %s20, 1
      %p64 = por %p62, %p63
      %p66 = scmp.ne.s32.totalorder %s51, %s65
      %p67 = scmp.eq.s32.totalorder %s20, 0
      %p68 = por %p66, %p67
      %s70 = sadd.s32 %s69, 1
      %p73 = scmp.eq.s32.totalorder %s14, 1
      %p74 = scmp.ne.s32.totalorder %s69, %s71
      %p75 = scmp.eq.s32.totalorder %s14, 0
      %p76 = por %p74, %p75
      %p77 = scmp.ne.s32.totalorder %s69, %s71
      %p78 = scmp.eq.s32.totalorder %s19, 1
      %p79 = por %p77, %p78
      %p80 = scmp.ne.s32.totalorder %s71, %s72
      %p81 = scmp.eq.s32.totalorder %s19, 0
      %p82 = por %p80, %p81
      %p83 = scmp.ne.s32.totalorder %s71, %s72
      %p84 = scmp.eq.s32.totalorder %s20, 1
      %p85 = por %p83, %p84
      %p87 = scmp.ne.s32.totalorder %s72, %s86
      %p88 = scmp.eq.s32.totalorder %s20, 0
      %p89 = por %p87, %p88
      %s91 = sadd.s32 %s90, 1
      %p94 = scmp.eq.s32.totalorder %s14, 1
      %p95 = scmp.ne.s32.totalorder %s90, %s92
      %p96 = scmp.eq.s32.totalorder %s14, 0
      %p97 = por %p95, %p96
      %p98 = scmp.ne.s32.totalorder %s90, %s92
      %p99 = scmp.eq.s32.totalorder %s19, 1
      %p100 = por %p98, %p99
      %p101 = scmp.ne.s32.totalorder %s92, %s93
      %p102 = scmp.eq.s32.totalorder %s19, 0
      %p103 = por %p101, %p102
      %p104 = scmp.ne.s32.totalorder %s92, %s93
      %p105 = scmp.eq.s32.totalorder %s20, 1
      %p106 = por %p104, %p105
      %p108 = scmp.ne.s32.totalorder %s93, %s107
      %p109 = scmp.eq.s32.totalorder %s20, 0
      %p110 = por %p108, %p109
      %s112 = sadd.s32 %s111, 1
      %p115 = scmp.eq.s32.totalorder %s14, 1
      %p116 = scmp.ne.s32.totalorder %s111, %s113
      %p117 = scmp.eq.s32.totalorder %s14, 0
      %p118 = por %p116, %p117
      %p119 = scmp.ne.s32.totalorder %s111, %s113
      %p120 = scmp.eq.s32.totalorder %s19, 1
      %p121 = por %p119, %p120
      %p122 = scmp.ne.s32.totalorder %s113, %s114
      %p123 = scmp.eq.s32.totalorder %s19, 0
      %p124 = por %p122, %p123
      %p125 = scmp.ne.s32.totalorder %s113, %s114
      %p126 = scmp.eq.s32.totalorder %s20, 1
      %p127 = por %p125, %p126
      %p129 = scmp.ne.s32.totalorder %s114, %s128
      %p130 = scmp.eq.s32.totalorder %s20, 0
      %p131 = por %p129, %p130
      %s133 = sadd.s32 %s132, 1
      %p136 = scmp.eq.s32.totalorder %s14, 1
      %p137 = scmp.ne.s32.totalorder %s132, %s134
      %p138 = scmp.eq.s32.totalorder %s14, 0
      %p139 = por %p137, %p138
      %p140 = scmp.ne.s32.totalorder %s132, %s134
      %p141 = scmp.eq.s32.totalorder %s19, 1
      %p142 = por %p140, %p141
      %p143 = scmp.ne.s32.totalorder %s134, %s135
      %p144 = scmp.eq.s32.totalorder %s19, 0
      %p145 = por %p143, %p144
      %p146 = scmp.ne.s32.totalorder %s134, %s135
      %p147 = scmp.eq.s32.totalorder %s20, 1
      %p148 = por %p146, %p147
      %p150 = scmp.ne.s32.totalorder %s135, %s149
      %p151 = scmp.eq.s32.totalorder %s20, 0
      %p152 = por %p150, %p151
      %s154 = sadd.s32 %s153, 1
      %p157 = scmp.eq.s32.totalorder %s14, 1
      %p158 = scmp.ne.s32.totalorder %s153, %s155
      %p159 = scmp.eq.s32.totalorder %s14, 0
      %p160 = por %p158, %p159
      %p161 = scmp.ne.s32.totalorder %s153, %s155
      %p162 = scmp.eq.s32.totalorder %s19, 1
      %p163 = por %p161, %p162
      %p164 = scmp.ne.s32.totalorder %s155, %s156
      %p165 = scmp.eq.s32.totalorder %s19, 0
      %p166 = por %p164, %p165
      %p167 = scmp.ne.s32.totalorder %s155, %s156
      %p168 = scmp.eq.s32.totalorder %s20, 1
      %p169 = por %p167, %p168
      %p171 = scmp.ne.s32.totalorder %s156, %s170
      %p172 = scmp.eq.s32.totalorder %s20, 0
      %p173 = por %p171, %p172
      %s174 = ssub.s32 %s14, %s21
      %p175 = scmp.eq.s32.totalorder %s174, 0
      %s177 = sadd.s32 %s176, 1
      %s178 = scalar_select %p175, %s176, %s177
      %p181 = pneg %p175
      %p182 = scmp.eq.s32.totalorder %s14, 1
      %p183 = por %p181, %p182
      %p184 = scmp.ne.s32.totalorder %s176, %s179
      %p185 = scmp.eq.s32.totalorder %s14, 0
      %p186 = por %p184, %p185
      %p187 = scmp.ne.s32.totalorder %s176, %s179
      %p188 = scmp.eq.s32.totalorder %s19, 1
      %p189 = por %p187, %p188
      %p190 = scmp.ne.s32.totalorder %s179, %s180
      %p191 = scmp.eq.s32.totalorder %s19, 0
      %p192 = por %p190, %p191
      %p193 = scmp.ne.s32.totalorder %s179, %s180
      %p194 = scmp.eq.s32.totalorder %s20, 1
      %p195 = por %p193, %p194
      %p197 = scmp.ne.s32.totalorder %s180, %s196
      %p198 = scmp.eq.s32.totalorder %s20, 0
      %p199 = por %p197, %p198
      %p200 = scmp.le.s32.totalorder 1, %s14
      %p201 = scmp.lt.s32.totalorder %s14, 3
      %p202 = pnand %p200, %p201
      %p203 = pneg %p202
      // Predicated region
      $region9: #{tpu_custom_call.1} parent=5 // pred_check
        _
      $region10: #{tpu_custom_call.1} parent=5 // pred_check_branch
        %205 = sbr.rel (%p202) target = $region12
      $region11: #{tpu_custom_call.1} parent=5 // pred_region
        %s206 = ssub.s32 %s14, 1
        // Predicated region
        $region13: #{tpu_custom_call.1} parent=11 // pred_check
          %p207 = pneg %p61
        $region14: #{tpu_custom_call.1} parent=11 // pred_check_branch
          %209 = sbr.rel (%p207) target = $region16
        $region15: #{tpu_custom_call.1} parent=11 // pred_region
          _
        $region16: #{tpu_custom_call.1} parent=11 // pred_fallthru
          _
        // Predicated region
        $region17: #{tpu_custom_call.1} parent=11 // pred_check
          %p210 = pneg %p82
        $region18: #{tpu_custom_call.1} parent=11 // pred_check_branch
          %212 = sbr.rel (%p210) target = $region20
        $region19: #{tpu_custom_call.1} parent=11 // pred_region
          _
        $region20: #{tpu_custom_call.1} parent=11 // pred_fallthru
          _
        // Predicated region
        $region21: #{tpu_custom_call.1} parent=11 // pred_check
          %p213 = pneg %p103
        $region22: #{tpu_custom_call.1} parent=11 // pred_check_branch
          %215 = sbr.rel (%p213) target = $region24
        $region23: #{tpu_custom_call.1} parent=11 // pred_region
          %s217 = ssub.s32 4096, 4096
          %218 = vsyncadd [#allocation3], %s217
          %s219 = sshll.u32 [#allocation2], 4
          %s220 = int_to_ptr.vmem [resolvable:$true] %s219
          %225 = dma.hbm_to_vmem [thread:$0]  %s3, 4096, %s220, [#allocation3], 128, 128, 8
        $region24: #{tpu_custom_call.1} parent=11 // pred_fallthru
          _
        // Predicated region
        $region25: #{tpu_custom_call.1} parent=11 // pred_check
          %p226 = pneg %p124
        $region26: #{tpu_custom_call.1} parent=11 // pred_check_branch
          %228 = sbr.rel (%p226) target = $region28
        $region27: #{tpu_custom_call.1} parent=11 // pred_region
          _
        $region28: #{tpu_custom_call.1} parent=11 // pred_fallthru
          _
        // Predicated region
        $region29: #{tpu_custom_call.1} parent=11 // pred_check
          %p229 = pneg %p145
        $region30: #{tpu_custom_call.1} parent=11 // pred_check_branch
          %231 = sbr.rel (%p229) target = $region32
        $region31: #{tpu_custom_call.1} parent=11 // pred_region
          _
        $region32: #{tpu_custom_call.1} parent=11 // pred_fallthru
          _
        // Predicated region
        $region33: #{tpu_custom_call.1} parent=11 // pred_check
          %p232 = pneg %p166
        $region34: #{tpu_custom_call.1} parent=11 // pred_check_branch
          %234 = sbr.rel (%p232) target = $region36
        $region35: #{tpu_custom_call.1} parent=11 // pred_region
          _
        $region36: #{tpu_custom_call.1} parent=11 // pred_fallthru
          _
      $region12: #{tpu_custom_call.1} parent=5 // pred_fallthru
        _
      %p235 = scmp.lt.s32.totalorder %s14, 2
      // Predicated region
      $region37: #{tpu_custom_call.1} parent=5 // pred_check
        %p236 = pneg %p235
      $region38: #{tpu_custom_call.1} parent=5 // pred_check_branch
        %238 = sbr.rel (%p236) target = $region40
      $region39: #{tpu_custom_call.1} parent=5 // pred_region
        // Predicated region
        $region41: #{tpu_custom_call.1} parent=39 // pred_check
          %p239 = pneg %p34
        $region42: #{tpu_custom_call.1} parent=39 // pred_check_branch
          %241 = sbr.rel (%p239) target = $region44
        $region43: #{tpu_custom_call.1} parent=39 // pred_region
          %s242 = smul.u32 6, %s14
          %p243 = scmp.lt.s32.totalorder %s242, 11
          %s244 = scalar_select %p243, %s242, 11
          %s245 = smul.addr %s244, 4
          %s246 = scalar_lea.vmem %s0, %s245
          %s247 = smul.u32 6, %s14
        $region44: #{tpu_custom_call.1} parent=39 // pred_fallthru
          _
      $region40: #{tpu_custom_call.1} parent=5 // pred_fallthru
        _
      %p248 = scmp.le.s32.totalorder 1, %s14
      %p249 = scmp.lt.s32.totalorder %s14, 3
      %p250 = pnand %p248, %p249
      %p251 = pneg %p250
      // Predicated region
      $region45: #{tpu_custom_call.1} parent=5 // pred_check
        _
      $region46: #{tpu_custom_call.1} parent=5 // pred_check_branch
        %253 = sbr.rel (%p250) target = $region48
      $region47: #{tpu_custom_call.1} parent=5 // pred_region
        %s254 = ssub.s32 %s14, 1
        // Predicated region
        $region49: #{tpu_custom_call.1} parent=47 // pred_check
          %p255 = pneg %p103
        $region50: #{tpu_custom_call.1} parent=47 // pred_check_branch
          %257 = sbr.rel (%p255) target = $region52
        $region51: #{tpu_custom_call.1} parent=47 // pred_region
          %258 = dma.done [#allocation3], 4096
        $region52: #{tpu_custom_call.1} parent=47 // pred_fallthru
          _
        %s259 = smul.u32 6, %s19
        %p260 = scmp.lt.s32.totalorder %s259, 11
        %s261 = scalar_select %p260, %s259, 11
        %s262 = smul.addr %s261, 4
        %s263 = scalar_lea.vmem %s0, %s262
        %p264 = pneg %p40
        %p265 = pneg %p37
        %p266 = pneg %p61
        %p267 = pneg %p58
        %p268 = pneg %p82
        %p269 = pneg %p79
        %p270 = pneg %p103
        %p271 = pneg %p100
        %p272 = pneg %p124
        %p273 = pneg %p121
        %p274 = pneg %p145
        %p275 = pneg %p142
        %p276 = pneg %p166
        %p277 = pneg %p163
        %p278 = pneg %p192
        %p279 = pneg %p189
        %s280 = smul.u32 6, %s19
        %p281 = scmp.lt.s32.totalorder %s280, 11
        %s282 = scalar_select %p281, %s280, 11
        %s283 = smul.addr %s282, 8
        %s284 = scalar_lea.vmem %s7, %s283
        %s285 = smul.u32 6, %s19
        %p286 = scmp.lt.s32.totalorder %s285, 11
        %s287 = scalar_select %p286, %s285, 11
        %s288 = smul.addr %s287, 4
        %s289 = scalar_lea.vmem %s0, %s288
        %s290 = smul.u32 6, %s19
        %s291 = smul.u32 6, %s19
        %p292 = scmp.lt.s32.totalorder %s291, 11
        %s293 = scalar_select %p292, %s291, 11
        %s294 = smul.addr %s293, 8
        %s295 = scalar_lea.vmem %s7, %s294
        %s296 = smul.u32 6, %s19
        %v298 = vld [vmem:[%s289] sm:$0xf]
        %v299 = vld [vmem:[%s289 + $0x4] sm:$0xf]
        %v300 = vld [vmem:[%s289 + $0x8] sm:$0xf]
        %v301 = vld [vmem:[%s289 + $0xc] sm:$0xf]
        %v302 = vld [vmem:[%s289 + $0x10] sm:$0xf]
        %v303 = vld [vmem:[%s289 + $0x14] sm:$0xf]
        %v304 = vld [vmem:[%s1] sm:$0xff]
        %v305 = vld [vmem:[%s1 + $0x8] sm:$0xff]
        %v306 = vld [vmem:[%s1 + $0x10] sm:$0xff]
        %v307 = vld [vmem:[%s1 + $0x18] sm:$0xff]
        %v308 = vld [vmem:[%s1 + $0x20] sm:$0xff]
        %v309 = vld [vmem:[%s1 + $0x28] sm:$0xff]
        %v310 = vld [vmem:[%s1 + $0x30] sm:$0xff]
        %v311 = vld [vmem:[%s1 + $0x38] sm:$0xff]
        %v312 = vld [vmem:[%s1 + $0x40] sm:$0xff]
        %v313 = vld [vmem:[%s1 + $0x48] sm:$0xff]
        %v314 = vld [vmem:[%s1 + $0x50] sm:$0xff]
        %v315 = vld [vmem:[%s1 + $0x58] sm:$0xff]
        %v316 = vld [vmem:[%s1 + $0x60] sm:$0xff]
        %v317 = vld [vmem:[%s1 + $0x68] sm:$0xff]
        %v318 = vld [vmem:[%s1 + $0x70] sm:$0xff]
        %v319 = vld [vmem:[%s1 + $0x78] sm:$0xff]
        %v320 = vld [vmem:[%s2] sm:$0x3]
        %v322 = vlaneseq
        %v323 = vshrl.u32 %v322, 7
        %v324 = vsub.s32 0, %v323
        %v325 = vrot.slane %v320, %v324
        %v326 = vlaneseq
        %v327 = vshrl.u32 %v326, 7
        %v328 = vsub.s32 1, %v327
        %v329 = vrot.slane %v320, %v328
        %v338 = vunpack.c.l.b16 %v298
        %v339 = vunpack.c.l.b16 %v299
        %v340 = vunpack.c.l.b16 %v300
        %v341 = vunpack.c.l.b16 %v301
        %v342 = vunpack.c.l.b16 %v302
        %v343 = vunpack.c.l.b16 %v303
        %v344 = vpack.c.b16 %v339, %v338
        %v345 = vpack.c.b16 %v341, %v340
        %v346 = vpack.c.b16 %v343, %v342
        %v366 = vunpack.c.l.b16 %v304
        %v367 = vunpack.c.h.b16 %v304
        %v368 = vunpack.c.l.b16 %v305
        %v369 = vunpack.c.h.b16 %v305
        %v370 = vunpack.c.l.b16 %v306
        %v371 = vunpack.c.h.b16 %v306
        %v372 = vunpack.c.l.b16 %v307
        %v373 = vunpack.c.h.b16 %v307
        %v374 = vunpack.c.l.b16 %v308
        %v375 = vunpack.c.h.b16 %v308
        %v376 = vunpack.c.l.b16 %v309
        %v377 = vunpack.c.h.b16 %v309
        %v378 = vunpack.c.l.b16 %v310
        %v379 = vunpack.c.h.b16 %v310
        %v380 = vunpack.c.l.b16 %v311
        %v381 = vunpack.c.h.b16 %v311
        %v382 = vunpack.c.l.b16 %v312
        %v383 = vunpack.c.h.b16 %v312
        %v384 = vunpack.c.l.b16 %v313
        %v385 = vunpack.c.h.b16 %v313
        %v386 = vunpack.c.l.b16 %v314
        %v387 = vunpack.c.h.b16 %v314
        %v388 = vunpack.c.l.b16 %v315
        %v389 = vunpack.c.h.b16 %v315
        %v390 = vunpack.c.l.b16 %v316
        %v391 = vunpack.c.h.b16 %v316
        %v392 = vunpack.c.l.b16 %v317
        %v393 = vunpack.c.h.b16 %v317
        %v394 = vunpack.c.l.b16 %v318
        %v395 = vunpack.c.h.b16 %v318
        %v396 = vunpack.c.l.b16 %v319
        %v397 = vunpack.c.h.b16 %v319
        %v398 = vpack.c.b16 %v368, %v366
        %v399 = vpack.c.b16 %v369, %v367
        %v400 = vpack.c.b16 %v372, %v370
        %v401 = vpack.c.b16 %v373, %v371
        %v402 = vpack.c.b16 %v376, %v374
        %v403 = vpack.c.b16 %v377, %v375
        %v404 = vpack.c.b16 %v380, %v378
        %v405 = vpack.c.b16 %v381, %v379
        %v406 = vpack.c.b16 %v384, %v382
        %v407 = vpack.c.b16 %v385, %v383
        %v408 = vpack.c.b16 %v388, %v386
        %v409 = vpack.c.b16 %v389, %v387
        %v410 = vpack.c.b16 %v392, %v390
        %v411 = vpack.c.b16 %v393, %v391
        %v412 = vpack.c.b16 %v396, %v394
        %v413 = vpack.c.b16 %v397, %v395
        %430 = vmatprep.subr.bf16.mxu0 %v413
        %431 = vmatpush1.bf16.msra.mxu0 %v412
        %432 = vmatprep.subr.bf16.mxu0 %v411
        %433 = vmatpush1.bf16.msra.mxu0 %v410
        %434 = vmatprep.subr.bf16.mxu0 %v409
        %435 = vmatpush1.bf16.msra.mxu0 %v408
        %436 = vmatprep.subr.bf16.mxu0 %v407
        %437 = vmatpush1.bf16.msra.mxu0 %v406
        %438 = vmatprep.subr.bf16.mxu0 %v405
        %439 = vmatpush1.bf16.msra.mxu0 %v404
        %440 = vmatprep.subr.bf16.mxu0 %v403
        %441 = vmatpush1.bf16.msra.mxu0 %v402
        %442 = vmatprep.subr.bf16.mxu0 %v401
        %443 = vmatpush1.bf16.msra.mxu0 %v400
        %444 = vmatprep.subr.bf16.mxu0 %v399
        %445 = vmatpush1.bf16.msra.mxu0 %v398
        %446 = vmatprep.subr.bf16.mxu0 0
        %447 = vmatpush2.bf16.msra.mxu0 0
        %448 = vmatprep.subr.bf16.mxu0 0
        %449 = vmatpush2.bf16.msra.mxu0 0
        %450 = vmatprep.subr.bf16.mxu0 0
        %451 = vmatpush2.bf16.msra.mxu0 0
        %452 = vmatprep.subr.bf16.mxu0 0
        %453 = vmatpush2.bf16.msra.mxu0 0
        %454 = vmatprep.subr.bf16.mxu0 0
        %455 = vmatpush2.bf16.msra.mxu0 0
        %456 = vmatprep.subr.bf16.mxu0 0
        %457 = vmatpush2.bf16.msra.mxu0 0
        %458 = vmatprep.subr.bf16.mxu0 0
        %459 = vmatpush2.bf16.msra.mxu0 0
        %460 = vmatprep.subr.bf16.mxu0 0
        %461 = vmatpush2.bf16.msra.mxu0 0
        %462 = vmatprep.mubr.bf16.mxu0 0
        %463 = vmatmul.mubr.bf16.gmra.mxu0 %v344
        %v464 = vpop.f32.mrf.mxu0
        %v465 = vadd.f32 %v325, %v464
        %v466 = vpop.f32.mrf.mxu0
        %v467 = vadd.f32 %v329, %v466
        %v468 = vpop.f32.mrf.mxu0
        %v469 = vadd.f32 %v325, %v468
        %v470 = vpop.f32.mrf.mxu0
        %v471 = vadd.f32 %v329, %v470
        %472 = vmatprep.mubr.bf16.mxu0 0
        %473 = vmatmul.mubr.bf16.gmra.mxu0 %v345
        %v474 = vpop.f32.mrf.mxu0
        %v475 = vadd.f32 %v325, %v474
        %v476 = vpop.f32.mrf.mxu0
        %v477 = vadd.f32 %v329, %v476
        %v478 = vpop.f32.mrf.mxu0
        %v479 = vadd.f32 %v325, %v478
        %v480 = vpop.f32.mrf.mxu0
        %v481 = vadd.f32 %v329, %v480
        %482 = vmatprep.mubr.bf16.mxu0 0
        %483 = vmatmul.mubr.bf16.gmra.mxu0 %v346
        %v484 = vpop.f32.mrf.mxu0
        %v485 = vadd.f32 %v325, %v484
        %v486 = vpop.f32.mrf.mxu0
        %v487 = vadd.f32 %v329, %v486
        %v488 = vpop.f32.mrf.mxu0
        %v489 = vadd.f32 %v325, %v488
        %v490 = vpop.f32.mrf.mxu0
        %v491 = vadd.f32 %v329, %v490
        %492 = vdwg.mxu0
        %v493 = vmax.f32 %v465, 0.0
        %v494 = vmax.f32 %v467, 0.0
        %v495 = vmax.f32 %v469, 0.0
        %v496 = vmax.f32 %v471, 0.0
        %v497 = vmax.f32 %v475, 0.0
        %v498 = vmax.f32 %v477, 0.0
        %v499 = vmax.f32 %v479, 0.0
        %v500 = vmax.f32 %v481, 0.0
        %v501 = vmax.f32 %v485, 0.0
        %v502 = vmax.f32 %v487, 0.0
        %v503 = vmax.f32 %v489, 0.0
        %v504 = vmax.f32 %v491, 0.0
        %v505 = vpack.c.bf16 %v495, %v493
        %v506 = vpack.c.bf16 %v496, %v494
        %v507 = vpack.c.bf16 %v499, %v497
        %v508 = vpack.c.bf16 %v500, %v498
        %v509 = vpack.c.bf16 %v503, %v501
        %v510 = vpack.c.bf16 %v504, %v502
        %v511 = vld [vmem:[#allocation2] sm:$0xff]
        %v512 = vld [vmem:[#allocation2 + $0x8] sm:$0xff]
        %v513 = vld [vmem:[#allocation2 + $0x10] sm:$0xff]
        %v514 = vld [vmem:[#allocation2 + $0x18] sm:$0xff]
        %v515 = vld [vmem:[#allocation2 + $0x20] sm:$0xff]
        %v516 = vld [vmem:[#allocation2 + $0x28] sm:$0xff]
        %v517 = vld [vmem:[#allocation2 + $0x30] sm:$0xff]
        %v518 = vld [vmem:[#allocation2 + $0x38] sm:$0xff]
        %v519 = vld [vmem:[#allocation2 + $0x40] sm:$0xff]
        %v520 = vld [vmem:[#allocation2 + $0x48] sm:$0xff]
        %v521 = vld [vmem:[#allocation2 + $0x50] sm:$0xff]
        %v522 = vld [vmem:[#allocation2 + $0x58] sm:$0xff]
        %v523 = vld [vmem:[#allocation2 + $0x60] sm:$0xff]
        %v524 = vld [vmem:[#allocation2 + $0x68] sm:$0xff]
        %v525 = vld [vmem:[#allocation2 + $0x70] sm:$0xff]
        %v526 = vld [vmem:[#allocation2 + $0x78] sm:$0xff]
        %v527 = vld [vmem:[#allocation2 + $0x80] sm:$0xff]
        %v528 = vld [vmem:[#allocation2 + $0x88] sm:$0xff]
        %v529 = vld [vmem:[#allocation2 + $0x90] sm:$0xff]
        %v530 = vld [vmem:[#allocation2 + $0x98] sm:$0xff]
        %v531 = vld [vmem:[#allocation2 + $0xa0] sm:$0xff]
        %v532 = vld [vmem:[#allocation2 + $0xa8] sm:$0xff]
        %v533 = vld [vmem:[#allocation2 + $0xb0] sm:$0xff]
        %v534 = vld [vmem:[#allocation2 + $0xb8] sm:$0xff]
        %v535 = vld [vmem:[#allocation2 + $0xc0] sm:$0xff]
        %v536 = vld [vmem:[#allocation2 + $0xc8] sm:$0xff]
        %v537 = vld [vmem:[#allocation2 + $0xd0] sm:$0xff]
        %v538 = vld [vmem:[#allocation2 + $0xd8] sm:$0xff]
        %v539 = vld [vmem:[#allocation2 + $0xe0] sm:$0xff]
        %v540 = vld [vmem:[#allocation2 + $0xe8] sm:$0xff]
        %v541 = vld [vmem:[#allocation2 + $0xf0] sm:$0xff]
        %v542 = vld [vmem:[#allocation2 + $0xf8] sm:$0xff]
        %v543 = vld [vmem:[%s4] sm:$0x3]
        %v545 = vlaneseq
        %v546 = vshrl.u32 %v545, 7
        %v547 = vsub.s32 0, %v546
        %v548 = vrot.slane %v543, %v547
        %v549 = vlaneseq
        %v550 = vshrl.u32 %v549, 7
        %v551 = vsub.s32 1, %v550
        %v552 = vrot.slane %v543, %v551
        %v587 = vunpack.c.l.b16 %v511
        %v588 = vunpack.c.h.b16 %v511
        %v589 = vunpack.c.l.b16 %v512
        %v590 = vunpack.c.h.b16 %v512
        %v591 = vunpack.c.l.b16 %v513
        %v592 = vunpack.c.h.b16 %v513
        %v593 = vunpack.c.l.b16 %v514
        %v594 = vunpack.c.h.b16 %v514
        %v595 = vunpack.c.l.b16 %v515
        %v596 = vunpack.c.h.b16 %v515
        %v597 = vunpack.c.l.b16 %v516
        %v598 = vunpack.c.h.b16 %v516
        %v599 = vunpack.c.l.b16 %v517
        %v600 = vunpack.c.h.b16 %v517
        %v601 = vunpack.c.l.b16 %v518
        %v602 = vunpack.c.h.b16 %v518
        %v603 = vunpack.c.l.b16 %v519
        %v604 = vunpack.c.h.b16 %v519
        %v605 = vunpack.c.l.b16 %v520
        %v606 = vunpack.c.h.b16 %v520
        %v607 = vunpack.c.l.b16 %v521
        %v608 = vunpack.c.h.b16 %v521
        %v609 = vunpack.c.l.b16 %v522
        %v610 = vunpack.c.h.b16 %v522
        %v611 = vunpack.c.l.b16 %v523
        %v612 = vunpack.c.h.b16 %v523
        %v613 = vunpack.c.l.b16 %v524
        %v614 = vunpack.c.h.b16 %v524
        %v615 = vunpack.c.l.b16 %v525
        %v616 = vunpack.c.h.b16 %v525
        %v617 = vunpack.c.l.b16 %v526
        %v618 = vunpack.c.h.b16 %v526
        %v619 = vunpack.c.l.b16 %v527
        %v620 = vunpack.c.h.b16 %v527
        %v621 = vunpack.c.l.b16 %v528
        %v622 = vunpack.c.h.b16 %v528
        %v623 = vunpack.c.l.b16 %v529
        %v624 = vunpack.c.h.b16 %v529
        %v625 = vunpack.c.l.b16 %v530
        %v626 = vunpack.c.h.b16 %v530
        %v627 = vunpack.c.l.b16 %v531
        %v628 = vunpack.c.h.b16 %v531
        %v629 = vunpack.c.l.b16 %v532
        %v630 = vunpack.c.h.b16 %v532
        %v631 = vunpack.c.l.b16 %v533
        %v632 = vunpack.c.h.b16 %v533
        %v633 = vunpack.c.l.b16 %v534
        %v634 = vunpack.c.h.b16 %v534
        %v635 = vunpack.c.l.b16 %v535
        %v636 = vunpack.c.h.b16 %v535
        %v637 = vunpack.c.l.b16 %v536
        %v638 = vunpack.c.h.b16 %v536
        %v639 = vunpack.c.l.b16 %v537
        %v640 = vunpack.c.h.b16 %v537
        %v641 = vunpack.c.l.b16 %v538
        %v642 = vunpack.c.h.b16 %v538
        %v643 = vunpack.c.l.b16 %v539
        %v644 = vunpack.c.h.b16 %v539
        %v645 = vunpack.c.l.b16 %v540
        %v646 = vunpack.c.h.b16 %v540
        %v647 = vunpack.c.l.b16 %v541
        %v648 = vunpack.c.h.b16 %v541
        %v649 = vunpack.c.l.b16 %v542
        %v650 = vunpack.c.h.b16 %v542
        %v651 = vpack.c.b16 %v589, %v587
        %v652 = vpack.c.b16 %v590, %v588
        %v653 = vpack.c.b16 %v593, %v591
        %v654 = vpack.c.b16 %v594, %v592
        %v655 = vpack.c.b16 %v597, %v595
        %v656 = vpack.c.b16 %v598, %v596
        %v657 = vpack.c.b16 %v601, %v599
        %v658 = vpack.c.b16 %v602, %v600
        %v659 = vpack.c.b16 %v605, %v603
        %v660 = vpack.c.b16 %v606, %v604
        %v661 = vpack.c.b16 %v609, %v607
        %v662 = vpack.c.b16 %v610, %v608
        %v663 = vpack.c.b16 %v613, %v611
        %v664 = vpack.c.b16 %v614, %v612
        %v665 = vpack.c.b16 %v617, %v615
        %v666 = vpack.c.b16 %v618, %v616
        %v667 = vpack.c.b16 %v621, %v619
        %v668 = vpack.c.b16 %v622, %v620
        %v669 = vpack.c.b16 %v625, %v623
        %v670 = vpack.c.b16 %v626, %v624
        %v671 = vpack.c.b16 %v629, %v627
        %v672 = vpack.c.b16 %v630, %v628
        %v673 = vpack.c.b16 %v633, %v631
        %v674 = vpack.c.b16 %v634, %v632
        %v675 = vpack.c.b16 %v637, %v635
        %v676 = vpack.c.b16 %v638, %v636
        %v677 = vpack.c.b16 %v641, %v639
        %v678 = vpack.c.b16 %v642, %v640
        %v679 = vpack.c.b16 %v645, %v643
        %v680 = vpack.c.b16 %v646, %v644
        %v681 = vpack.c.b16 %v649, %v647
        %v682 = vpack.c.b16 %v650, %v648
        %715 = vmatprep.subr.bf16.mxu0 %v666
        %716 = vmatpush1.bf16.msra.mxu0 %v665
        %717 = vmatprep.subr.bf16.mxu0 %v664
        %718 = vmatpush1.bf16.msra.mxu0 %v663
        %719 = vmatprep.subr.bf16.mxu0 %v662
        %720 = vmatpush1.bf16.msra.mxu0 %v661
        %721 = vmatprep.subr.bf16.mxu0 %v660
        %722 = vmatpush1.bf16.msra.mxu0 %v659
        %723 = vmatprep.subr.bf16.mxu0 %v658
        %724 = vmatpush1.bf16.msra.mxu0 %v657
        %725 = vmatprep.subr.bf16.mxu0 %v656
        %726 = vmatpush1.bf16.msra.mxu0 %v655
        %727 = vmatprep.subr.bf16.mxu0 %v654
        %728 = vmatpush1.bf16.msra.mxu0 %v653
        %729 = vmatprep.subr.bf16.mxu0 %v652
        %730 = vmatpush1.bf16.msra.mxu0 %v651
        %731 = vmatprep.subr.bf16.mxu0 %v682
        %732 = vmatpush2.bf16.msra.mxu0 %v681
        %733 = vmatprep.subr.bf16.mxu0 %v680
        %734 = vmatpush2.bf16.msra.mxu0 %v679
        %735 = vmatprep.subr.bf16.mxu0 %v678
        %736 = vmatpush2.bf16.msra.mxu0 %v677
        %737 = vmatprep.subr.bf16.mxu0 %v676
        %738 = vmatpush2.bf16.msra.mxu0 %v675
        %739 = vmatprep.subr.bf16.mxu0 %v674
        %740 = vmatpush2.bf16.msra.mxu0 %v673
        %741 = vmatprep.subr.bf16.mxu0 %v672
        %742 = vmatpush2.bf16.msra.mxu0 %v671
        %743 = vmatprep.subr.bf16.mxu0 %v670
        %744 = vmatpush2.bf16.msra.mxu0 %v669
        %745 = vmatprep.subr.bf16.mxu0 %v668
        %746 = vmatpush2.bf16.msra.mxu0 %v667
        %747 = vmatprep.mubr.bf16.mxu0 %v506
        %748 = vmatmul.mubr.bf16.gmra.mxu0 %v505
        %v749 = vpop.f32.mrf.mxu0
        %v750 = vadd.f32 %v548, %v749
        %v751 = vpop.f32.mrf.mxu0
        %v752 = vadd.f32 %v552, %v751
        %v753 = vpop.f32.mrf.mxu0
        %v754 = vadd.f32 %v548, %v753
        %v755 = vpop.f32.mrf.mxu0
        %v756 = vadd.f32 %v552, %v755
        %757 = vmatprep.mubr.bf16.mxu0 %v508
        %758 = vmatmul.mubr.bf16.gmra.mxu0 %v507
        %v759 = vpop.f32.mrf.mxu0
        %v760 = vadd.f32 %v548, %v759
        %v761 = vpop.f32.mrf.mxu0
        %v762 = vadd.f32 %v552, %v761
        %v763 = vpop.f32.mrf.mxu0
        %v764 = vadd.f32 %v548, %v763
        %v765 = vpop.f32.mrf.mxu0
        %v766 = vadd.f32 %v552, %v765
        %767 = vmatprep.mubr.bf16.mxu0 %v510
        %768 = vmatmul.mubr.bf16.gmra.mxu0 %v509
        %v769 = vpop.f32.mrf.mxu0
        %v770 = vadd.f32 %v548, %v769
        %v771 = vpop.f32.mrf.mxu0
        %v772 = vadd.f32 %v552, %v771
        %v773 = vpop.f32.mrf.mxu0
        %v774 = vadd.f32 %v548, %v773
        %v775 = vpop.f32.mrf.mxu0
        %v776 = vadd.f32 %v552, %v775
        %777 = vdwg.mxu0
        %v778 = vmax.f32 %v750, 0.0
        %v779 = vmax.f32 %v752, 0.0
        %v780 = vmax.f32 %v754, 0.0
        %v781 = vmax.f32 %v756, 0.0
        %v782 = vmax.f32 %v760, 0.0
        %v783 = vmax.f32 %v762, 0.0
        %v784 = vmax.f32 %v764, 0.0
        %v785 = vmax.f32 %v766, 0.0
        %v786 = vmax.f32 %v770, 0.0
        %v787 = vmax.f32 %v772, 0.0
        %v788 = vmax.f32 %v774, 0.0
        %v789 = vmax.f32 %v776, 0.0
        %v790 = vpack.c.bf16 %v780, %v778
        %v791 = vpack.c.bf16 %v781, %v779
        %v792 = vpack.c.bf16 %v784, %v782
        %v793 = vpack.c.bf16 %v785, %v783
        %v794 = vpack.c.bf16 %v788, %v786
        %v795 = vpack.c.bf16 %v789, %v787
        %v796 = vld [vmem:[%s5] sm:$0xf]
        %v797 = vld [vmem:[%s5 + $0x4] sm:$0xf]
        %v798 = vld [vmem:[%s5 + $0x8] sm:$0xf]
        %v799 = vld [vmem:[%s5 + $0xc] sm:$0xf]
        %v800 = vld [vmem:[%s5 + $0x10] sm:$0xf]
        %v801 = vld [vmem:[%s5 + $0x14] sm:$0xf]
        %v802 = vld [vmem:[%s5 + $0x18] sm:$0xf]
        %v803 = vld [vmem:[%s5 + $0x1c] sm:$0xf]
        %v804 = vld [vmem:[%s5 + $0x20] sm:$0xf]
        %v805 = vld [vmem:[%s5 + $0x24] sm:$0xf]
        %v806 = vld [vmem:[%s5 + $0x28] sm:$0xf]
        %v807 = vld [vmem:[%s5 + $0x2c] sm:$0xf]
        %v808 = vld [vmem:[%s5 + $0x30] sm:$0xf]
        %v809 = vld [vmem:[%s5 + $0x34] sm:$0xf]
        %v810 = vld [vmem:[%s5 + $0x38] sm:$0xf]
        %v811 = vld [vmem:[%s5 + $0x3c] sm:$0xf]
        %v812 = vld [vmem:[%s5 + $0x40] sm:$0xf]
        %v813 = vld [vmem:[%s5 + $0x44] sm:$0xf]
        %v814 = vld [vmem:[%s5 + $0x48] sm:$0xf]
        %v815 = vld [vmem:[%s5 + $0x4c] sm:$0xf]
        %v816 = vld [vmem:[%s5 + $0x50] sm:$0xf]
        %v817 = vld [vmem:[%s5 + $0x54] sm:$0xf]
        %v818 = vld [vmem:[%s5 + $0x58] sm:$0xf]
        %v819 = vld [vmem:[%s5 + $0x5c] sm:$0xf]
        %v820 = vld [vmem:[%s5 + $0x60] sm:$0xf]
        %v821 = vld [vmem:[%s5 + $0x64] sm:$0xf]
        %v822 = vld [vmem:[%s5 + $0x68] sm:$0xf]
        %v823 = vld [vmem:[%s5 + $0x6c] sm:$0xf]
        %v824 = vld [vmem:[%s5 + $0x70] sm:$0xf]
        %v825 = vld [vmem:[%s5 + $0x74] sm:$0xf]
        %v826 = vld [vmem:[%s5 + $0x78] sm:$0xf]
        %v827 = vld [vmem:[%s5 + $0x7c] sm:$0xf]
        %v828 = vld [vmem:[%s6] sm:$0x1]
        %v830 = vlaneseq
        %v831 = vshrl.u32 %v830, 7
        %v832 = vsub.s32 0, %v831
        %v833 = vrot.slane %v828, %v832
        %v867 = vunpack.c.l.b16 %v796
        %v868 = vunpack.c.l.b16 %v797
        %v869 = vunpack.c.l.b16 %v798
        %v870 = vunpack.c.l.b16 %v799
        %v871 = vunpack.c.l.b16 %v800
        %v872 = vunpack.c.l.b16 %v801
        %v873 = vunpack.c.l.b16 %v802
        %v874 = vunpack.c.l.b16 %v803
        %v875 = vunpack.c.l.b16 %v804
        %v876 = vunpack.c.l.b16 %v805
        %v877 = vunpack.c.l.b16 %v806
        %v878 = vunpack.c.l.b16 %v807
        %v879 = vunpack.c.l.b16 %v808
        %v880 = vunpack.c.l.b16 %v809
        %v881 = vunpack.c.l.b16 %v810
        %v882 = vunpack.c.l.b16 %v811
        %v883 = vunpack.c.l.b16 %v812
        %v884 = vunpack.c.l.b16 %v813
        %v885 = vunpack.c.l.b16 %v814
        %v886 = vunpack.c.l.b16 %v815
        %v887 = vunpack.c.l.b16 %v816
        %v888 = vunpack.c.l.b16 %v817
        %v889 = vunpack.c.l.b16 %v818
        %v890 = vunpack.c.l.b16 %v819
        %v891 = vunpack.c.l.b16 %v820
        %v892 = vunpack.c.l.b16 %v821
        %v893 = vunpack.c.l.b16 %v822
        %v894 = vunpack.c.l.b16 %v823
        %v895 = vunpack.c.l.b16 %v824
        %v896 = vunpack.c.l.b16 %v825
        %v897 = vunpack.c.l.b16 %v826
        %v898 = vunpack.c.l.b16 %v827
        %v899 = vpack.c.b16 %v868, %v867
        %v900 = vpack.c.b16 %v870, %v869
        %v901 = vpack.c.b16 %v872, %v871
        %v902 = vpack.c.b16 %v874, %v873
        %v903 = vpack.c.b16 %v876, %v875
        %v904 = vpack.c.b16 %v878, %v877
        %v905 = vpack.c.b16 %v880, %v879
        %v906 = vpack.c.b16 %v882, %v881
        %v907 = vpack.c.b16 %v884, %v883
        %v908 = vpack.c.b16 %v886, %v885
        %v909 = vpack.c.b16 %v888, %v887
        %v910 = vpack.c.b16 %v890, %v889
        %v911 = vpack.c.b16 %v892, %v891
        %v912 = vpack.c.b16 %v894, %v893
        %v913 = vpack.c.b16 %v896, %v895
        %v914 = vpack.c.b16 %v898, %v897
        %931 = vmatprep.subr.bf16.mxu0 0
        %932 = vmatpush1.bf16.msra.mxu0 %v906
        %933 = vmatprep.subr.bf16.mxu0 0
        %934 = vmatpush1.bf16.msra.mxu0 %v905
        %935 = vmatprep.subr.bf16.mxu0 0
        %936 = vmatpush1.bf16.msra.mxu0 %v904
        %937 = vmatprep.subr.bf16.mxu0 0
        %938 = vmatpush1.bf16.msra.mxu0 %v903
        %939 = vmatprep.subr.bf16.mxu0 0
        %940 = vmatpush1.bf16.msra.mxu0 %v902
        %941 = vmatprep.subr.bf16.mxu0 0
        %942 = vmatpush1.bf16.msra.mxu0 %v901
        %943 = vmatprep.subr.bf16.mxu0 0
        %944 = vmatpush1.bf16.msra.mxu0 %v900
        %945 = vmatprep.subr.bf16.mxu0 0
        %946 = vmatpush1.bf16.msra.mxu0 %v899
        %947 = vmatprep.subr.bf16.mxu0 0
        %948 = vmatpush2.bf16.msra.mxu0 %v914
        %949 = vmatprep.subr.bf16.mxu0 0
        %950 = vmatpush2.bf16.msra.mxu0 %v913
        %951 = vmatprep.subr.bf16.mxu0 0
        %952 = vmatpush2.bf16.msra.mxu0 %v912
        %953 = vmatprep.subr.bf16.mxu0 0
        %954 = vmatpush2.bf16.msra.mxu0 %v911
        %955 = vmatprep.subr.bf16.mxu0 0
        %956 = vmatpush2.bf16.msra.mxu0 %v910
        %957 = vmatprep.subr.bf16.mxu0 0
        %958 = vmatpush2.bf16.msra.mxu0 %v909
        %959 = vmatprep.subr.bf16.mxu0 0
        %960 = vmatpush2.bf16.msra.mxu0 %v908
        %961 = vmatprep.subr.bf16.mxu0 0
        %962 = vmatpush2.bf16.msra.mxu0 %v907
        %963 = vmatprep.mubr.bf16.mxu0 %v791
        %964 = vmatmul.mubr.bf16.gmra.mxu0 %v790
        %v965 = vpop.f32.mrf.mxu0
        %v966 = vadd.f32 %v833, %v965
        %v967 = vpop.f32.mrf.mxu0
        %v968 = vpop.f32.mrf.mxu0
        %v969 = vadd.f32 %v833, %v968
        %v970 = vpop.f32.mrf.mxu0
        %971 = vmatprep.mubr.bf16.mxu0 %v793
        %972 = vmatmul.mubr.bf16.gmra.mxu0 %v792
        %v973 = vpop.f32.mrf.mxu0
        %v974 = vadd.f32 %v833, %v973
        %v975 = vpop.f32.mrf.mxu0
        %v976 = vpop.f32.mrf.mxu0
        %v977 = vadd.f32 %v833, %v976
        %v978 = vpop.f32.mrf.mxu0
        %979 = vmatprep.mubr.bf16.mxu0 %v795
        %980 = vmatmul.mubr.bf16.gmra.mxu0 %v794
        %v981 = vpop.f32.mrf.mxu0
        %v982 = vadd.f32 %v833, %v981
        %v983 = vpop.f32.mrf.mxu0
        %v984 = vpop.f32.mrf.mxu0
        %v985 = vadd.f32 %v833, %v984
        %v986 = vpop.f32.mrf.mxu0
        %987 = vdwg.mxu0
        %vm988 = vcmask 523264
        %989 = vst.msk [vmem:[%s295] sm:$0xff] %vm988, %v966
        %990 = vst.msk [vmem:[%s295 + $0x8] sm:$0xff] %vm988, %v969
        %991 = vst.msk [vmem:[%s295 + $0x10] sm:$0xff] %vm988, %v974
        %992 = vst.msk [vmem:[%s295 + $0x18] sm:$0xff] %vm988, %v977
        %993 = vst.msk [vmem:[%s295 + $0x20] sm:$0xff] %vm988, %v982
        %994 = vst.msk [vmem:[%s295 + $0x28] sm:$0xff] %vm988, %v985
        %s995 = smul.u32 6, %s19
        %p996 = scmp.lt.s32.totalorder %s995, 11
        %s997 = scalar_select %p996, %s995, 11
        %s998 = smul.addr %s997, 8
        %s999 = scalar_lea.vmem %s7, %s998
        // Predicated region
        $region53: #{tpu_custom_call.1} parent=47 // pred_check
          %p1000 = pneg %p189
        $region54: #{tpu_custom_call.1} parent=47 // pred_check_branch
          %1002 = sbr.rel (%p1000) target = $region56
        $region55: #{tpu_custom_call.1} parent=47 // pred_region
          %s1003 = smul.u32 6, %s19
        $region56: #{tpu_custom_call.1} parent=47 // pred_fallthru
          _
      $region48: #{tpu_custom_call.1} parent=5 // pred_fallthru
        _
      %p1004 = scmp.le.s32.totalorder 2, %s14
      // Predicated region
      $region57: #{tpu_custom_call.1} parent=5 // pred_check
        %p1005 = pneg %p1004
      $region58: #{tpu_custom_call.1} parent=5 // pred_check_branch
        %1007 = sbr.rel (%p1005) target = $region60
      $region59: #{tpu_custom_call.1} parent=5 // pred_region
        %s1008 = ssub.s32 %s14, 2
        // Predicated region
        $region61: #{tpu_custom_call.1} parent=59 // pred_check
          %p1009 = pneg %p195
        $region62: #{tpu_custom_call.1} parent=59 // pred_check_branch
          %1011 = sbr.rel (%p1009) target = $region64
        $region63: #{tpu_custom_call.1} parent=59 // pred_region
          %s1012 = smul.u32 6, %s20
          %p1013 = scmp.lt.s32.totalorder %s1012, 11
          %s1014 = scalar_select %p1013, %s1012, 11
          %s1015 = smul.addr %s1014, 8
          %s1016 = scalar_lea.vmem %s7, %s1015
        $region64: #{tpu_custom_call.1} parent=59 // pred_fallthru
          _
      $region60: #{tpu_custom_call.1} parent=5 // pred_fallthru
        _
    $region6: #{tpu_custom_call.1} parent=1 // loop_footer
      %s18 = sadd.s32 1, %s14
    $region7: #{tpu_custom_call.1} parent=1 // loop_footer_branch
      %13 = sbr.rel target = $region3
    $region8: #{tpu_custom_call.1} parent=1 // loop_exit
      _
    %1017 = vsyncpa [#allocation3], 1
    %s1018 = scalar_lea.sflag [#allocation3], 1
    %1019 = vsyncpa %s1018, 1

</llo_original>
